<compile_context>
chip_gen: v7x
topology: tpu7x:2x2x1
jax: 0.10.0
libtpu: 0.0.40
codegen_flags: <defaults>
</compile_context>

<pallas_src>
import functools

import jax
import jax.numpy as jnp
from jax.experimental import pallas as pl
from jax.experimental.pallas import tpu as pltpu


def _round_up(x, m):
    return (x + m - 1) // m * m


def _value_network_kernel(x_ref, w_ref, b_ref, o_ref, *, state_size, hidden_size):
    S = state_size
    H = hidden_size
    S_pad = _round_up(S, 8)                     # weight-slab row offsets (8-aligned)
    compute_dtype = w_ref.dtype                 # f32, or bf16 for the MXU-input path

    # State tile, cast to the MXU input dtype.
    x = x_ref[...].astype(compute_dtype)                                   # [TB, S]

    # Static slices out of the packed weight slab (resident in VMEM across grid).
    w1 = w_ref[0:S, :]                                                     # [S, H]
    w2 = w_ref[S_pad:S_pad + H, :]                                         # [H, H]
    w3_row = w_ref[S_pad + H:S_pad + H + 1, :].astype(jnp.float32)         # [1, H]

    # Biases stay float32 (VPU work is f32 on all of v5e/v6e/v7x).
    b1 = b_ref[0:1, :]                                                     # [1, H]
    b2 = b_ref[1:2, :]                                                     # [1, H]
    b3 = b_ref[2:3, 0:1]                                                   # [1, 1]

    # Layers 1 & 2 on the MXU with f32 accumulation; bias + ReLU in f32.
    h1 = jnp.maximum(
        jnp.dot(x, w1, preferred_element_type=jnp.float32) + b1, 0.0)      # [TB, H]
    h2 = jnp.maximum(
        jnp.dot(h1.astype(compute_dtype), w2,
                preferred_element_type=jnp.float32) + b2, 0.0)             # [TB, H]

    # Final H -> 1 projection: multiply + lane reduce (VPU/XLU), avoids an
    # N=1 MXU pass that would use 1/256 of the MXU columns.
    v = jnp.sum(h2 * w3_row, axis=-1, keepdims=True) + b3                  # [TB, 1]
    o_ref[...] = v.astype(o_ref.dtype)


def value_network_forward(state, packed_params, *, tile_b=None):
    """state: [B, state_size] float32. packed_params: {'w_slab', 'b_slab'}."""
    w_slab = packed_params["w_slab"]
    b_slab = packed_params["b_slab"]
    B, S = state.shape
    H = w_slab.shape[1]

    if tile_b is None:
        tile_b = min(512, _round_up(max(B, 1), 8))
    tile_b = _round_up(tile_b, 8)

    B_pad = _round_up(B, tile_b)
    if B_pad != B:
        state = jnp.pad(state, ((0, B_pad - B), (0, 0)))

    kernel = functools.partial(
        _value_network_kernel, state_size=S, hidden_size=H)

    out = pl.pallas_call(
        kernel,
        out_shape=jax.ShapeDtypeStruct((B_pad, 1), jnp.float32),
        grid=(B_pad // tile_b,),
        in_specs=[
            pl.BlockSpec((tile_b, S), lambda i: (i, 0)),      # state tile advances
            pl.BlockSpec(w_slab.shape, lambda i: (0, 0)),     # weights VMEM-resident
            pl.BlockSpec(b_slab.shape, lambda i: (0, 0)),     # biases VMEM-resident
        ],
        out_specs=pl.BlockSpec((tile_b, 1), lambda i: (i, 0)),
        compiler_params=pltpu.CompilerParams(
            dimension_semantics=("parallel",)),               # use both v7x TCs
    )(state, w_slab, b_slab)
    return out[:B]


def init_value_network_params(key, state_size, hidden_size, init_w=0.003):
    """PyTorch-equivalent init: linear1/2 ~ U(-1/sqrt(fan_in), +), linear3 ~ U(-init_w, +).
    Weights stored [in, out]; biases [1, out] / [1, 1]."""
    k1, k2, k3, k4, k5, k6 = jax.random.split(key, 6)
    lim1 = 1.0 / float(state_size) ** 0.5
    lim2 = 1.0 / float(hidden_size) ** 0.5
    return {
        "w1": jax.random.uniform(k1, (state_size, hidden_size), jnp.float32, -lim1, lim1),
        "b1": jax.random.uniform(k2, (1, hidden_size), jnp.float32, -lim1, lim1),
        "w2": jax.random.uniform(k3, (hidden_size, hidden_size), jnp.float32, -lim2, lim2),
        "b2": jax.random.uniform(k4, (1, hidden_size), jnp.float32, -lim2, lim2),
        "w3": jax.random.uniform(k5, (hidden_size, 1), jnp.float32, -init_w, init_w),
        "b3": jax.random.uniform(k6, (1, 1), jnp.float32, -init_w, init_w),
    }


def pack_value_network_params(params, weight_dtype=jnp.float32):
    """Pack w1/w2/w3 into one [S_pad + H + 1, H] slab (weight_dtype) and
    b1/b2/b3 into one [8, H] float32 slab (rows 0,1 = b1,b2; [2,0] = b3)."""
    w1, b1 = params["w1"], params["b1"]
    w2, b2 = params["w2"], params["b2"]
    w3, b3 = params["w3"], params["b3"]
    S, H = w1.shape
    S_pad = _round_up(S, 8)

    w_slab = jnp.zeros((S_pad + H + 1, H), jnp.float32)
    w_slab = w_slab.at[0:S, :].set(w1)
    w_slab = w_slab.at[S_pad:S_pad + H, :].set(w2)
    w_slab = w_slab.at[S_pad + H, :].set(w3[:, 0])
    w_slab = w_slab.astype(weight_dtype)

    b_slab = jnp.zeros((8, H), jnp.float32)
    b_slab = b_slab.at[0, :].set(b1[0])
    b_slab = b_slab.at[1, :].set(b2[0])
    b_slab = b_slab.at[2, 0].set(b3[0, 0])
    return {"w_slab": w_slab, "b_slab": b_slab}


def reference_forward(state, params, weight_dtype=jnp.float32):
    """Plain-JAX reference with the same math as the kernel."""
    cast = lambda a: a.astype(weight_dtype)
    h1 = jnp.maximum(
        jnp.dot(cast(state), cast(params["w1"]),
                preferred_element_type=jnp.float32) + params["b1"], 0.0)
    h2 = jnp.maximum(
        jnp.dot(cast(h1), cast(params["w2"]),
                preferred_element_type=jnp.float32) + params["b2"], 0.0)
    w3_row = params["w3"].astype(weight_dtype).astype(jnp.float32).reshape(1, -1)
    return jnp.sum(h2 * w3_row, axis=-1, keepdims=True) + params["b3"]


if __name__ == "__main__":
    # Cartpole SAC shapes: state_size=4, hidden=32, batch=8.
    B, STATE_SIZE, HIDDEN = 8, 4, 32

    key = jax.random.PRNGKey(0)
    k_params, k_state = jax.random.split(key)
    params = init_value_network_params(k_params, STATE_SIZE, HIDDEN)
    state = jax.random.normal(k_state, (B, STATE_SIZE), jnp.float32)

    # 1) Exact f32 path (matches the PyTorch module's semantics).
    packed_f32 = pack_value_network_params(params, jnp.float32)
    out = jax.block_until_ready(value_network_forward(state, packed_f32))
    assert out.shape == (B, 1) and out.dtype == jnp.float32
    ref = reference_forward(state, params, jnp.float32)
    assert jnp.allclose(out, ref, atol=1e-5, rtol=1e-4)

    # 2) bf16 MXU-input path (v6e/v7x bandwidth lever); f32 accumulate/bias/ReLU.
    packed_bf16 = pack_value_network_params(params, jnp.bfloat16)
    out_bf16 = jax.block_until_ready(value_network_forward(state, packed_bf16))
    ref_bf16 = reference_forward(state, params, jnp.bfloat16)
    assert jnp.allclose(out_bf16, ref_bf16, atol=5e-3, rtol=5e-2)

    # 3) Larger, non-multiple-of-tile batch to exercise the batch grid + padding.
    big_state = jax.random.normal(jax.random.PRNGKey(1), (1000, STATE_SIZE),
                                  jnp.float32)
    out_big = jax.block_until_ready(
        value_network_forward(big_state, packed_f32, tile_b=256))
    ref_big = reference_forward(big_state, params, jnp.float32)
    assert out_big.shape == (1000, 1)
    assert jnp.allclose(out_big, ref_big, atol=1e-5, rtol=1e-4)

    print("KERNEL_OK")
</pallas_src>

<mosaic_0001>
module attributes {stable_mosaic.version = 11 : i64} {
  func.func @_value_network_kernel(%arg0: i32, %arg1: memref<8x4xf32, #tpu.memory_space<vmem>>, %arg2: memref<41x32xf32, #tpu.memory_space<vmem>>, %arg3: memref<8x32xf32, #tpu.memory_space<vmem>>, %arg4: memref<8x1xf32, #tpu.memory_space<vmem>>) attributes {dimension_semantics = [#tpu.dimension_semantics<parallel>], iteration_bounds = array<i64: 1>, scalar_prefetch = 0 : i64, scratch_operands = 0 : i64, tpu.core_type = #tpu.core_type<tc>, window_params = [{transform_indices = @transform_0, window_bounds = array<i64: 8, 4>}, {pipeline_mode = #tpu.pipeline_mode<synchronous>, transform_indices = @transform_1, window_bounds = array<i64: 41, 32>}, {pipeline_mode = #tpu.pipeline_mode<synchronous>, transform_indices = @transform_2, window_bounds = array<i64: 8, 32>}, {transform_indices = @transform_3, window_bounds = array<i64: 8, 1>}]} {
    %c0 = arith.constant 0 : index
    %c0_0 = arith.constant 0 : index
    %0 = vector.load %arg1[%c0, %c0_0] : memref<8x4xf32, #tpu.memory_space<vmem>>, vector<8x4xf32>
    %c0_1 = arith.constant 0 : index
    %c0_2 = arith.constant 0 : index
    %1 = vector.load %arg2[%c0_1, %c0_2] : memref<41x32xf32, #tpu.memory_space<vmem>>, vector<4x32xf32>
    %c8 = arith.constant 8 : index
    %c0_3 = arith.constant 0 : index
    %2 = vector.load %arg2[%c8, %c0_3] : memref<41x32xf32, #tpu.memory_space<vmem>>, vector<32x32xf32>
    %c40 = arith.constant 40 : index
    %c0_4 = arith.constant 0 : index
    %3 = vector.load %arg2[%c40, %c0_4] : memref<41x32xf32, #tpu.memory_space<vmem>>, vector<1x32xf32>
    %c0_5 = arith.constant 0 : index
    %c0_6 = arith.constant 0 : index
    %4 = vector.load %arg3[%c0_5, %c0_6] : memref<8x32xf32, #tpu.memory_space<vmem>>, vector<1x32xf32>
    %c1 = arith.constant 1 : index
    %c0_7 = arith.constant 0 : index
    %5 = vector.load %arg3[%c1, %c0_7] : memref<8x32xf32, #tpu.memory_space<vmem>>, vector<1x32xf32>
    %c2 = arith.constant 2 : index
    %c0_8 = arith.constant 0 : index
    %6 = vector.load %arg3[%c2, %c0_8] : memref<8x32xf32, #tpu.memory_space<vmem>>, vector<1x1xf32>
    %cst = arith.constant dense<0.000000e+00> : vector<8x32xf32>
    %7 = tpu.matmul %0, %1, %cst {dimension_numbers = #tpu.dot_dimension_numbers<[1], [0], [0], [1], [0, 0, 1, 1], [], []>} : vector<8x4xf32>, vector<4x32xf32>, vector<8x32xf32> -> vector<8x32xf32>
    %8 = vector.broadcast %4 : vector<1x32xf32> to vector<8x32xf32>
    %9 = arith.addf %7, %8 : vector<8x32xf32>
    %cst_9 = arith.constant 0.000000e+00 : f32
    %10 = vector.broadcast %cst_9 : f32 to vector<8x32xf32>
    %11 = arith.maximumf %9, %10 : vector<8x32xf32>
    %cst_10 = arith.constant dense<0.000000e+00> : vector<8x32xf32>
    %12 = tpu.matmul %11, %2, %cst_10 {dimension_numbers = #tpu.dot_dimension_numbers<[1], [0], [0], [1], [0, 0, 1, 1], [], []>} : vector<8x32xf32>, vector<32x32xf32>, vector<8x32xf32> -> vector<8x32xf32>
    %13 = vector.broadcast %5 : vector<1x32xf32> to vector<8x32xf32>
    %14 = arith.addf %12, %13 : vector<8x32xf32>
    %cst_11 = arith.constant 0.000000e+00 : f32
    %15 = vector.broadcast %cst_11 : f32 to vector<8x32xf32>
    %16 = arith.maximumf %14, %15 : vector<8x32xf32>
    %17 = vector.broadcast %3 : vector<1x32xf32> to vector<8x32xf32>
    %18 = arith.mulf %16, %17 : vector<8x32xf32>
    %cst_12 = arith.constant dense<0.000000e+00> : vector<8xf32>
    %19 = vector.multi_reduction <add>, %18, %cst_12 [1] : vector<8x32xf32> to vector<8xf32>
    %20 = vector.shape_cast %19 : vector<8xf32> to vector<8x1xf32>
    %21 = vector.broadcast %6 : vector<1x1xf32> to vector<8x1xf32>
    %22 = arith.addf %20, %21 : vector<8x1xf32>
    %c0_13 = arith.constant 0 : index
    %c0_14 = arith.constant 0 : index
    %23 = vector.load %arg4[%c0_13, %c0_14] : memref<8x1xf32, #tpu.memory_space<vmem>>, vector<8x1xf32>
    tpu.vector_store %arg4[%c0_13, %c0_14], %22 {strides = array<i32>} : memref<8x1xf32, #tpu.memory_space<vmem>>, vector<8x1xf32>,
    return
  }
  func.func @transform_0(%arg0: i32) -> (i32, i32) {
    %c0_i32 = arith.constant 0 : i32
    %c0_i32_0 = arith.constant 0 : i32
    return %arg0, %c0_i32 : i32, i32
  }
  func.func @transform_1(%arg0: i32) -> (i32, i32) {
    %c0_i32 = arith.constant 0 : i32
    %c0_i32_0 = arith.constant 0 : i32
    %c0_i32_1 = arith.constant 0 : i32
    return %c0_i32, %c0_i32_0 : i32, i32
  }
  func.func @transform_2(%arg0: i32) -> (i32, i32) {
    %c0_i32 = arith.constant 0 : i32
    %c0_i32_0 = arith.constant 0 : i32
    %c0_i32_1 = arith.constant 0 : i32
    return %c0_i32, %c0_i32_0 : i32, i32
  }
  func.func @transform_3(%arg0: i32) -> (i32, i32) {
    %c0_i32 = arith.constant 0 : i32
    %c0_i32_0 = arith.constant 0 : i32
    return %arg0, %c0_i32 : i32, i32
  }
}

</mosaic_0001>

<llo_original>
// kernel: tpu_custom_call.1
$region0: #{tpu_custom_call.1}
  #allocation0 [shape = 'u32[]', space=smem, size = 0x4, offset = 0x4, fixed_abs, tag = 'smem constant byte address 0x4 - core index']
  #allocation1 [shape = 'u32[144,128]{1,0:T(1,128)}', space=vmem, size = 0x12000, scoped, tag = 'internal scratch']
  %s0 = inlined_call_operand.vmem [shape: f32[8,4], index: 0, kind: input, shape index: {}]
  %s1 = inlined_call_operand.vmem [shape: f32[41,32], index: 1, kind: input, shape index: {}]
  %s2 = inlined_call_operand.vmem [shape: f32[8,32], index: 2, kind: input, shape index: {}]
  %s3 = inlined_call_operand.vmem [shape: f32[8,1], index: 3, kind: output, shape index: {}]
  %s4 = sld [smem:[#allocation0]]
  $region22: #{tpu_custom_call.1} parent=0
    _
  %s6 = ssub.s32 1, %s4
  %s7 = scalar_select 0, %s6, %s4
  // Predicated region
  $region2: #{tpu_custom_call.1} parent=0 // pred_check
    _
  $region3: #{tpu_custom_call.1} parent=0 // pred_check_branch
    %9 = sbr.rel (0) target = $region5
  $region4: #{tpu_custom_call.1} parent=0 // pred_region
    _
  $region5: #{tpu_custom_call.1} parent=0 // pred_fallthru
    _
  // Predicated region
  $region6: #{tpu_custom_call.1} parent=0 // pred_check
    _
  $region7: #{tpu_custom_call.1} parent=0 // pred_check_branch
    %11 = sbr.rel (0) target = $region9
  $region8: #{tpu_custom_call.1} parent=0 // pred_region
    _
  $region9: #{tpu_custom_call.1} parent=0 // pred_fallthru
    _
  // Predicated region
  $region10: #{tpu_custom_call.1} parent=0 // pred_check
    _
  $region11: #{tpu_custom_call.1} parent=0 // pred_check_branch
    %13 = sbr.rel (0) target = $region13
  $region12: #{tpu_custom_call.1} parent=0 // pred_region
    _
  $region13: #{tpu_custom_call.1} parent=0 // pred_fallthru
    _
  %v14 = vld [vmem:[%s0] sm:$0xff]
  %v15 = vld [vmem:[%s1] sm:$0xf]
  %v16 = vld [vmem:[%s1 + $0x8] sm:$0xff]
  %v17 = vld [vmem:[%s1 + $0x10] sm:$0xff]
  %v18 = vld [vmem:[%s1 + $0x18] sm:$0xff]
  %v19 = vld [vmem:[%s1 + $0x20] sm:$0xff]
  %v20 = vld [vmem:[%s1 + $0x28] sm:$0x1]
  %v21 = vld [vmem:[%s2] sm:$0x1]
  %v22 = vld [vmem:[%s2 + $0x1] sm:$0x1]
  %v23 = vld [vmem:[%s2 + $0x2] sm:$0x1]
  %v24 = vlaneseq
  %v25 = vshrl.u32 %v24, 7
  %v26 = vsub.s32 0, %v25
  %v27 = vrot.slane %v21, %v26
  %vm28 = vcmask 31744
  %v30 = vsel %vm28, %v14, 0
  %vm32 = vcmask 1043456
  %v34 = vsel %vm32, %v15, 0
  %36 = vmatprep.subr.mxu0 0.0
  %37 = vmatpush1.msra.mxu0 %v34
  %38 = vmatprep.subr.mxu0 0.0
  %39 = vmatpush1.msra.mxu0 0.0
  %40 = vmatprep.subr.mxu0 0.0
  %41 = vmatpush1.msra.mxu0 0.0
  %42 = vmatprep.subr.mxu0 0.0
  %43 = vmatpush1.msra.mxu0 0.0
  %44 = vmatprep.subr.mxu0 0.0
  %45 = vmatpush1.msra.mxu0 0.0
  %46 = vmatprep.subr.mxu0 0.0
  %47 = vmatpush1.msra.mxu0 0.0
  %48 = vmatprep.subr.mxu0 0.0
  %49 = vmatpush1.msra.mxu0 0.0
  %50 = vmatprep.subr.mxu0 0.0
  %51 = vmatpush1.msra.mxu0 0.0
  %52 = vmatprep.subr.mxu0 0.0
  %53 = vmatpush1.msra.mxu0 0.0
  %54 = vmatprep.subr.mxu0 0.0
  %55 = vmatpush1.msra.mxu0 0.0
  %56 = vmatprep.subr.mxu0 0.0
  %57 = vmatpush1.msra.mxu0 0.0
  %58 = vmatprep.subr.mxu0 0.0
  %59 = vmatpush1.msra.mxu0 0.0
  %60 = vmatprep.subr.mxu0 0.0
  %61 = vmatpush1.msra.mxu0 0.0
  %62 = vmatprep.subr.mxu0 0.0
  %63 = vmatpush1.msra.mxu0 0.0
  %64 = vmatprep.subr.mxu0 0.0
  %65 = vmatpush1.msra.mxu0 0.0
  %66 = vmatprep.subr.mxu0 0.0
  %67 = vmatpush1.msra.mxu0 0.0
  %68 = vmatprep.subr.mxu0 0.0
  %69 = vmatpush1.msra.mxu0 0.0
  %70 = vmatprep.subr.mxu0 0.0
  %71 = vmatpush1.msra.mxu0 0.0
  %72 = vmatprep.subr.mxu0 0.0
  %73 = vmatpush1.msra.mxu0 0.0
  %74 = vmatprep.subr.mxu0 0.0
  %75 = vmatpush1.msra.mxu0 0.0
  %76 = vmatprep.subr.mxu0 0.0
  %77 = vmatpush1.msra.mxu0 0.0
  %78 = vmatprep.subr.mxu0 0.0
  %79 = vmatpush1.msra.mxu0 0.0
  %80 = vmatprep.subr.mxu0 0.0
  %81 = vmatpush1.msra.mxu0 0.0
  %82 = vmatprep.subr.mxu0 0.0
  %83 = vmatpush1.msra.mxu0 0.0
  %84 = vmatprep.subr.mxu0 0.0
  %85 = vmatpush1.msra.mxu0 0.0
  %86 = vmatprep.subr.mxu0 0.0
  %87 = vmatpush1.msra.mxu0 0.0
  %88 = vmatprep.subr.mxu0 0.0
  %89 = vmatpush1.msra.mxu0 0.0
  %90 = vmatprep.subr.mxu0 0.0
  %91 = vmatpush1.msra.mxu0 0.0
  %92 = vmatprep.subr.mxu0 0.0
  %93 = vmatpush1.msra.mxu0 0.0
  %94 = vmatprep.subr.mxu0 0.0
  %95 = vmatpush1.msra.mxu0 0.0
  %96 = vmatprep.subr.mxu0 0.0
  %97 = vmatpush1.msra.mxu0 0.0
  %98 = vmatprep.subr.mxu0 0.0
  %99 = vmatpush1.msra.mxu0 0.0
  %100 = vmatprep.mubr.f32.mxu0 0.0
  %101 = vmatmul.mubr.f32.gmra.mrb[0].mxu0 %v30
  %v102 = vpop.f32.mrb[0].mxu0
  %v103 = vadd.f32 %v27, %v102
  %v104 = vpop.f32.mrb[0].mxu0
  %105 = vdwg.mxu0
  %v106 = vmax.f32 %v103, 0.0
  %v107 = vlaneseq
  %v108 = vshrl.u32 %v107, 7
  %v109 = vsub.s32 0, %v108
  %v110 = vrot.slane %v22, %v109
  %vm111 = vcmask 261120
  %v113 = vsel %vm111, %v106, 0
  %115 = vmatprep.subr.mxu0 0.0
  %116 = vmatpush1.msra.mxu0 %v16
  %117 = vmatprep.subr.mxu0 0.0
  %118 = vmatpush1.msra.mxu0 %v17
  %119 = vmatprep.subr.mxu0 0.0
  %120 = vmatpush1.msra.mxu0 %v18
  %121 = vmatprep.subr.mxu0 0.0
  %122 = vmatpush1.msra.mxu0 %v19
  %123 = vmatprep.subr.mxu0 0.0
  %124 = vmatpush1.msra.mxu0 0.0
  %125 = vmatprep.subr.mxu0 0.0
  %126 = vmatpush1.msra.mxu0 0.0
  %127 = vmatprep.subr.mxu0 0.0
  %128 = vmatpush1.msra.mxu0 0.0
  %129 = vmatprep.subr.mxu0 0.0
  %130 = vmatpush1.msra.mxu0 0.0
  %131 = vmatprep.subr.mxu0 0.0
  %132 = vmatpush1.msra.mxu0 0.0
  %133 = vmatprep.subr.mxu0 0.0
  %134 = vmatpush1.msra.mxu0 0.0
  %135 = vmatprep.subr.mxu0 0.0
  %136 = vmatpush1.msra.mxu0 0.0
  %137 = vmatprep.subr.mxu0 0.0
  %138 = vmatpush1.msra.mxu0 0.0
  %139 = vmatprep.subr.mxu0 0.0
  %140 = vmatpush1.msra.mxu0 0.0
  %141 = vmatprep.subr.mxu0 0.0
  %142 = vmatpush1.msra.mxu0 0.0
  %143 = vmatprep.subr.mxu0 0.0
  %144 = vmatpush1.msra.mxu0 0.0
  %145 = vmatprep.subr.mxu0 0.0
  %146 = vmatpush1.msra.mxu0 0.0
  %147 = vmatprep.subr.mxu0 0.0
  %148 = vmatpush1.msra.mxu0 0.0
  %149 = vmatprep.subr.mxu0 0.0
  %150 = vmatpush1.msra.mxu0 0.0
  %151 = vmatprep.subr.mxu0 0.0
  %152 = vmatpush1.msra.mxu0 0.0
  %153 = vmatprep.subr.mxu0 0.0
  %154 = vmatpush1.msra.mxu0 0.0
  %155 = vmatprep.subr.mxu0 0.0
  %156 = vmatpush1.msra.mxu0 0.0
  %157 = vmatprep.subr.mxu0 0.0
  %158 = vmatpush1.msra.mxu0 0.0
  %159 = vmatprep.subr.mxu0 0.0
  %160 = vmatpush1.msra.mxu0 0.0
  %161 = vmatprep.subr.mxu0 0.0
  %162 = vmatpush1.msra.mxu0 0.0
  %163 = vmatprep.subr.mxu0 0.0
  %164 = vmatpush1.msra.mxu0 0.0
  %165 = vmatprep.subr.mxu0 0.0
  %166 = vmatpush1.msra.mxu0 0.0
  %167 = vmatprep.subr.mxu0 0.0
  %168 = vmatpush1.msra.mxu0 0.0
  %169 = vmatprep.subr.mxu0 0.0
  %170 = vmatpush1.msra.mxu0 0.0
  %171 = vmatprep.subr.mxu0 0.0
  %172 = vmatpush1.msra.mxu0 0.0
  %173 = vmatprep.subr.mxu0 0.0
  %174 = vmatpush1.msra.mxu0 0.0
  %175 = vmatprep.subr.mxu0 0.0
  %176 = vmatpush1.msra.mxu0 0.0
  %177 = vmatprep.subr.mxu0 0.0
  %178 = vmatpush1.msra.mxu0 0.0
  %179 = vmatprep.mubr.f32.mxu0 0.0
  %180 = vmatmul.mubr.f32.gmra.mrb[0].mxu0 %v113
  %v181 = vpop.f32.mrb[0].mxu0
  %v182 = vadd.f32 %v110, %v181
  %v183 = vpop.f32.mrb[0].mxu0
  %184 = vdwg.mxu0
  %v185 = vmax.f32 %v182, 0.0
  %v186 = vlaneseq
  %v187 = vshrl.u32 %v186, 7
  %v188 = vsub.s32 0, %v187
  %v189 = vrot.slane %v20, %v188
  %v190 = vmul.f32 %v185, %v189
  %v191 = vsel %vm111, %v190, 0.0
  %192 = vadd.xlane.f32.xlu0 %v191
  %v193 = vpop.xlane.xlu0 %192
  %v194 = vlaneseq
  %v195 = vshrl.u32 %v194, 7
  %v196 = vsub.s32 0, %v195
  %v197 = vrot.slane %v23, %v196
  %v198 = vadd.f32 %v193, %v197
  %vm199 = vcmask 7168
  %200 = vst.msk [vmem:[%s3] sm:$0xff] %vm199, %v198
  // Predicated region
  $region14: #{tpu_custom_call.1} parent=0 // pred_check
    _
  $region15: #{tpu_custom_call.1} parent=0 // pred_check_branch
    %202 = sbr.rel (0) target = $region17
  $region16: #{tpu_custom_call.1} parent=0 // pred_region
    _
  $region17: #{tpu_custom_call.1} parent=0 // pred_fallthru
    _
  // Predicated region
  $region18: #{tpu_custom_call.1} parent=0 // pred_check
    _
  $region19: #{tpu_custom_call.1} parent=0 // pred_check_branch
    %204 = sbr.rel (0) target = $region21
  $region20: #{tpu_custom_call.1} parent=0 // pred_region
    _
  $region21: #{tpu_custom_call.1} parent=0 // pred_fallthru
    _

</llo_original>
